<compile_context>
chip_gen: v6e
topology: v6e:2x2x1
jax: 0.10.0
libtpu: 0.0.40
codegen_flags: <defaults>
</compile_context>

<pallas_src>
import functools
import math

import jax
import jax.numpy as jnp
from jax.experimental import pallas as pl
from jax.experimental.pallas import tpu as pltpu

_BIG = 1e30            # finite sentinel; avoids inf - inf = NaN in masked reductions
_LANE = 128
_LABEL_PAD = -(2 ** 31)  # padded-row label; never equals a real class id


def _triplet_mine_kernel(xr_ref, xct_ref, sqr_ref, sqc_ref, tr_ref, tc_ref,
                         out_ref, maxsq_ref, minsq_ref, *, margin, tm):
    """Online hard-positive / hard-negative mining over one (TM, TK) tile.

    The candidate axis (program_id(1)) is the reduction axis: running max/min
    of the squared distances live in VMEM scratch; the per-anchor loss is
    written only on the last candidate step.
    """
    j = pl.program_id(1)

    @pl.when(j == 0)
    def _init():
        maxsq_ref[...] = jnp.full((tm, 1), -_BIG, dtype=jnp.float32)
        minsq_ref[...] = jnp.full((tm, 1), _BIG, dtype=jnp.float32)

    # MXU gram tile: (tm, d) @ (d, tk) with f32 accumulation.  Candidates are
    # pre-transposed in the wrapper so the contraction is canonical (no vxpose
    # burned per grid step); operands arrive already in the matmul dtype.
    gram = jax.lax.dot_general(
        xr_ref[...], xct_ref[...], (((1,), (0,)), ((), ())),
        preferred_element_type=jnp.float32,
    )                                                            # (TM, TK) f32

    # Squared pairwise distances (sqrt deferred to finalize).  Padded candidate
    # columns carry a +_BIG squared norm and a sentinel label (set in the
    # wrapper), so they can never win the hard-negative min nor match a real
    # class for the hard-positive max -- no per-step iota/column mask needed.
    dist2 = sqr_ref[...] + sqc_ref[...] - 2.0 * gram             # (TM, TK)

    same = tr_ref[...] == tc_ref[...]                            # (TM, TK)
    pos = jnp.where(same, dist2, -_BIG)
    neg = jnp.where(same, _BIG, dist2)

    maxsq_ref[...] = jnp.maximum(maxsq_ref[...],
                                 jnp.max(pos, axis=1, keepdims=True))
    minsq_ref[...] = jnp.minimum(minsq_ref[...],
                                 jnp.min(neg, axis=1, keepdims=True))

    @pl.when(j == pl.num_programs(1) - 1)
    def _finalize():
        # clamp(1e-12) + sqrt only on the two mined values per anchor
        # (monotonic, so the arg-selection matches mining on true distances).
        d_ap = jnp.sqrt(jnp.maximum(maxsq_ref[...], 1e-12))      # (TM, 1)
        d_an = jnp.sqrt(jnp.maximum(minsq_ref[...], 1e-12))      # (TM, 1)
        out_ref[...] = jnp.maximum(d_ap - d_an + jnp.float32(margin), 0.0)
        # TODO(synk): if store/epilogue stalls show up in profiles, emit a
        # lane-dense (1, tm) output block instead of this (tm, 1) column.


def _round_up(x, m):
    return (x + m - 1) // m * m


def _vmem_estimate(tm, tk, d, mm_bytes):
    """Conservative VMEM footprint: double-buffered matmul tiles + f32 temps."""
    tiles = 2 * (tm * d + d * tk) * mm_bytes      # xr and xcT, double-buffered
    temps = 3 * tm * tk * 4                       # gram/dist2/pos/neg live ranges
    small = 4 * (tm + tk) * 4 + 4 * tm * 4        # norm/label tiles + scratch/out
    return tiles + temps + small


def triplet_loss_pallas(inputs, targets, margin=0.3, *,
                        block_m=512, block_k=512,
                        matmul_dtype=jnp.bfloat16,
                        candidate_resident=None,
                        candidate_buffers=2,
                        vmem_budget_bytes=40 * 1024 * 1024):
    """TripletLoss forward.  inputs: (n, d) float32/bfloat16; targets: (n,) int.

    Performance notes
    -----------------
    * The candidate stream is re-read from HBM once per anchor-row tile, so
      total candidate traffic scales with 1/block_m.  block_m (NOT block_k) is
      the lever that moves the kernel off the HBM roofline; block_k only
      amortizes the ~0.35us per-grid-step overhead.
        - v5e: block_m 256-512 (roofline break-even ~256); raise
               vmem_budget_bytes past the 16 MiB scoped default; consider
               candidate_buffers=3 if the candidate DMA is still exposed.
        - v6e: block_m 512-1024, block_k 512 (break-even ~700).
        - v7x: block_m 384-512, block_k 512; keep the VMEM estimate under the
               halved 64 MiB budget and make n_pad/block_m >= 2 and even so the
               "parallel" axis splits across both TensorCores.
    * matmul_dtype=bf16 (default) feeds the MXU its native dtype and halves
      HBM/VMEM traffic; accumulation and all distance math stay f32.
    * If the whole candidate set fits vmem_budget_bytes it is kept resident
      (block_k = n_pad, constant index map => candidates DMA'd exactly once).
      Raise the budget (e.g. ~96 MiB) on v5e/v6e to extend that regime; keep
      the conservative default on v7x.
    """
    x = jnp.asarray(inputs)
    if x.dtype not in (jnp.float32, jnp.bfloat16):
        x = x.astype(jnp.float32)
    n, d = x.shape
    t = jnp.asarray(targets).astype(jnp.int32)

    mm_dtype = jnp.dtype(matmul_dtype)
    mm_bytes = mm_dtype.itemsize

    # ---- tile-size / residency selection -----------------------------------
    n128 = _round_up(n, _LANE)
    tm = min(_round_up(block_m, _LANE), n128)

    n_pad_res = _round_up(n, tm)
    resident_fits = _vmem_estimate(tm, n_pad_res, d, mm_bytes) <= vmem_budget_bytes
    use_resident = resident_fits if candidate_resident is None else bool(candidate_resident)

    if use_resident:
        n_pad = n_pad_res
        tk = n_pad
    else:
        tk = min(_round_up(block_k, _LANE), n128)
        while _vmem_estimate(tm, tk, d, mm_bytes) > vmem_budget_bytes and tk > _LANE:
            tk = max(_LANE, _round_up(tk // 2, _LANE))
        while _vmem_estimate(tm, tk, d, mm_bytes) > vmem_budget_bytes and tm > _LANE:
            tm = max(_LANE, _round_up(tm // 2, _LANE))
        n_pad = _round_up(n, math.lcm(tm, tk))

    # ---- host-side prep (one-time, O(n*d)) ----------------------------------
    x_pad = jnp.pad(x, ((0, n_pad - n), (0, 0)))
    t_pad = jnp.pad(t, (0, n_pad - n), constant_values=_LABEL_PAD)

    # Squared norms computed once, in f32, from the un-cast features.
    sq = jnp.sum(x_pad.astype(jnp.float32) ** 2, axis=1)            # (n_pad,)
    col_real = jnp.arange(n_pad) < n
    sq_col = sq.reshape(n_pad, 1)                                   # anchor norms
    sq_row = jnp.where(col_real, sq, _BIG).reshape(1, n_pad)        # candidate norms, +BIG pad
    t_col = t_pad.reshape(n_pad, 1)
    t_row = t_pad.reshape(1, n_pad)

    x_mm = x_pad.astype(mm_dtype)        # (n_pad, d) anchor stream
    xt_mm = x_mm.T                       # (d, n_pad) candidate stream, pre-transposed

    grid = (n_pad // tm, n_pad // tk)

    cand_kwargs = {}
    if candidate_buffers != 2:
        cand_kwargs["pipeline_mode"] = pl.Buffered(candidate_buffers)
    cand_spec = pl.BlockSpec((d, tk), lambda i, j: (0, j), **cand_kwargs)

    est = _vmem_estimate(tm, tk, d, mm_bytes)
    vmem_limit = int(min(max(32 * 1024 * 1024, est + 8 * 1024 * 1024),
                         128 * 1024 * 1024))

    cost = pl.CostEstimate(
        flops=2 * n_pad * n_pad * d,
        transcendentals=0,
        bytes_accessed=int((grid[0] * n_pad * d + n_pad * d) * mm_bytes
                           + 12 * n_pad),
    )

    per_anchor = pl.pallas_call(
        functools.partial(_triplet_mine_kernel, margin=float(margin), tm=tm),
        out_shape=jax.ShapeDtypeStruct((n_pad, 1), jnp.float32),
        grid_spec=pltpu.PrefetchScalarGridSpec(
            num_scalar_prefetch=0,
            grid=grid,
            in_specs=[
                pl.BlockSpec((tm, d), lambda i, j: (i, 0)),   # anchor features
                cand_spec,                                    # candidate features (d, tk)
                pl.BlockSpec((tm, 1), lambda i, j: (i, 0)),   # anchor sq-norms
                pl.BlockSpec((1, tk), lambda i, j: (0, j)),   # candidate sq-norms (+BIG pad)
                pl.BlockSpec((tm, 1), lambda i, j: (i, 0)),   # anchor labels
                pl.BlockSpec((1, tk), lambda i, j: (0, j)),   # candidate labels
            ],
            out_specs=pl.BlockSpec((tm, 1), lambda i, j: (i, 0)),
            scratch_shapes=[pltpu.VMEM((tm, 1), jnp.float32),   # running max dist^2 (pos)
                            pltpu.VMEM((tm, 1), jnp.float32)],  # running min dist^2 (neg)
        ),
        compiler_params=pltpu.CompilerParams(
            dimension_semantics=("parallel", "arbitrary"),
            vmem_limit_bytes=vmem_limit),
        cost_estimate=cost,
    )(x_mm, xt_mm, sq_col, sq_row, t_col, t_row)

    # MarginRankingLoss(dist_an, dist_ap, y=1) = mean(relu(dist_ap - dist_an + margin))
    # Mean over the *real* anchors only (padded rows excluded).
    return jnp.sum(per_anchor[:n, 0]) / jnp.float32(n)


def triplet_loss_ref(inputs, targets, margin=0.3):
    """Pure-JAX reference mirroring the PyTorch forward."""
    x = inputs.astype(jnp.float32)
    sq = jnp.sum(x * x, axis=1, keepdims=True)
    dist2 = sq + sq.T - 2.0 * jnp.matmul(x, x.T, precision=jax.lax.Precision.HIGHEST)
    dist = jnp.sqrt(jnp.maximum(dist2, 1e-12))
    mask = targets[:, None] == targets[None, :]
    dist_ap = jnp.max(jnp.where(mask, dist, -jnp.inf), axis=1)
    dist_an = jnp.min(jnp.where(mask, jnp.inf, dist), axis=1)
    return jnp.mean(jnp.maximum(dist_ap - dist_an + margin, 0.0))


if __name__ == "__main__":
    key = jax.random.PRNGKey(0)
    k1, k2 = jax.random.split(key)

    # --- small case: n=8 anchors, d=32 features (single-tile, resident) -----
    n, dfeat = 8, 32
    inputs = jax.random.normal(k1, (n, dfeat), dtype=jnp.float32)
    # Quantize to multiples of 1/8 so the features are exactly representable
    # in bf16 -> the bf16 MXU path agrees with the f32 reference.
    inputs = jnp.round(inputs * 8.0) / 8.0
    targets = jnp.array([0, 0, 1, 1, 2, 2, 3, 3], dtype=jnp.int32)

    ref = jax.block_until_ready(triplet_loss_ref(inputs, targets, margin=0.3))

    loss = jax.block_until_ready(triplet_loss_pallas(inputs, targets, margin=0.3))
    assert jnp.allclose(loss, ref, atol=2e-3, rtol=2e-3), (loss, ref)

    loss_f32 = jax.block_until_ready(
        triplet_loss_pallas(inputs, targets, margin=0.3, matmul_dtype=jnp.float32))
    assert jnp.allclose(loss_f32, ref, atol=1e-4, rtol=1e-4), (loss_f32, ref)

    # --- tiled multi-block path: padding + online accumulation over j -------
    n2, d2 = 300, 64
    inputs2 = jnp.round(jax.random.normal(k2, (n2, d2), dtype=jnp.float32) * 8.0) / 8.0
    targets2 = jnp.arange(n2, dtype=jnp.int32) % 50   # every class appears 6x

    ref2 = jax.block_until_ready(triplet_loss_ref(inputs2, targets2, margin=0.3))

    loss2 = jax.block_until_ready(
        triplet_loss_pallas(inputs2, targets2, margin=0.3,
                            block_m=128, block_k=128, candidate_resident=False))
    assert jnp.allclose(loss2, ref2, atol=2e-3, rtol=2e-3), (loss2, ref2)

    loss2_f32 = jax.block_until_ready(
        triplet_loss_pallas(inputs2, targets2, margin=0.3,
                            block_m=128, block_k=128,
                            matmul_dtype=jnp.float32, candidate_resident=False))
    assert jnp.allclose(loss2_f32, ref2, atol=1e-4, rtol=1e-4), (loss2_f32, ref2)

    print("KERNEL_OK")
</pallas_src>

<mosaic_0001>
module attributes {stable_mosaic.version = 11 : i64} {
  func.func @_triplet_mine_kernel(%arg0: i32, %arg1: i32, %arg2: memref<128x32xbf16, #tpu.memory_space<vmem>>, %arg3: memref<32x128xbf16, #tpu.memory_space<vmem>>, %arg4: memref<128x1xf32, #tpu.memory_space<vmem>>, %arg5: memref<1x128xf32, #tpu.memory_space<vmem>>, %arg6: memref<128x1xi32, #tpu.memory_space<vmem>>, %arg7: memref<1x128xi32, #tpu.memory_space<vmem>>, %arg8: memref<128x1xf32, #tpu.memory_space<vmem>>, %arg9: memref<128x1xf32, #tpu.memory_space<vmem>>, %arg10: memref<128x1xf32, #tpu.memory_space<vmem>>) attributes {dimension_semantics = [#tpu.dimension_semantics<parallel>, #tpu.dimension_semantics<arbitrary>], iteration_bounds = array<i64: 1, 1>, scalar_prefetch = 0 : i64, scratch_operands = 2 : i64, tpu.core_type = #tpu.core_type<tc>, window_params = [{transform_indices = @transform_0, window_bounds = array<i64: 128, 32>}, {transform_indices = @transform_1, window_bounds = array<i64: 32, 128>}, {transform_indices = @transform_2, window_bounds = array<i64: 128, 1>}, {transform_indices = @transform_3, window_bounds = array<i64: 1, 128>}, {transform_indices = @transform_4, window_bounds = array<i64: 128, 1>}, {transform_indices = @transform_5, window_bounds = array<i64: 1, 128>}, {transform_indices = @transform_6, window_bounds = array<i64: 128, 1>}]} {
    %c0_i32 = arith.constant 0 : i32
    %0 = arith.cmpi eq, %arg1, %c0_i32 : i32
    %1 = arith.extui %0 : i1 to i32
    %c0_i32_0 = arith.constant 0 : i32
    %2 = arith.cmpi ne, %1, %c0_i32_0 : i32
    scf.if %2 {
      %cst_27 = arith.constant -1.000000e+30 : f32
      %36 = vector.broadcast %cst_27 : f32 to vector<128x1xf32>
      %c0_28 = arith.constant 0 : index
      %c0_29 = arith.constant 0 : index
      %37 = vector.load %arg9[%c0_28, %c0_29] : memref<128x1xf32, #tpu.memory_space<vmem>>, vector<128x1xf32>
      tpu.vector_store %arg9[%c0_28, %c0_29], %36 {strides = array<i32>} : memref<128x1xf32, #tpu.memory_space<vmem>>, vector<128x1xf32>,
      %cst_30 = arith.constant 1.000000e+30 : f32
      %38 = vector.broadcast %cst_30 : f32 to vector<128x1xf32>
      %c0_31 = arith.constant 0 : index
      %c0_32 = arith.constant 0 : index
      %39 = vector.load %arg10[%c0_31, %c0_32] : memref<128x1xf32, #tpu.memory_space<vmem>>, vector<128x1xf32>
      tpu.vector_store %arg10[%c0_31, %c0_32], %38 {strides = array<i32>} : memref<128x1xf32, #tpu.memory_space<vmem>>, vector<128x1xf32>,
    } else {
    }
    %c0 = arith.constant 0 : index
    %c0_1 = arith.constant 0 : index
    %3 = vector.load %arg2[%c0, %c0_1] : memref<128x32xbf16, #tpu.memory_space<vmem>>, vector<128x32xbf16>
    %c0_2 = arith.constant 0 : index
    %c0_3 = arith.constant 0 : index
    %4 = vector.load %arg3[%c0_2, %c0_3] : memref<32x128xbf16, #tpu.memory_space<vmem>>, vector<32x128xbf16>
    %cst = arith.constant dense<0.000000e+00> : vector<128x128xf32>
    %5 = tpu.matmul %3, %4, %cst {dimension_numbers = #tpu.dot_dimension_numbers<[1], [0], [0], [1], [0, 0, 1, 1], [], []>} : vector<128x32xbf16>, vector<32x128xbf16>, vector<128x128xf32> -> vector<128x128xf32>
    %c0_4 = arith.constant 0 : index
    %c0_5 = arith.constant 0 : index
    %6 = vector.load %arg4[%c0_4, %c0_5] : memref<128x1xf32, #tpu.memory_space<vmem>>, vector<128x1xf32>
    %c0_6 = arith.constant 0 : index
    %c0_7 = arith.constant 0 : index
    %7 = vector.load %arg5[%c0_6, %c0_7] : memref<1x128xf32, #tpu.memory_space<vmem>>, vector<1x128xf32>
    %8 = vector.broadcast %6 : vector<128x1xf32> to vector<128x128xf32>
    %9 = vector.broadcast %7 : vector<1x128xf32> to vector<128x128xf32>
    %10 = arith.addf %8, %9 : vector<128x128xf32>
    %cst_8 = arith.constant 2.000000e+00 : f32
    %11 = vector.broadcast %cst_8 : f32 to vector<128x128xf32>
    %12 = arith.mulf %11, %5 : vector<128x128xf32>
    %13 = arith.subf %10, %12 : vector<128x128xf32>
    %c0_9 = arith.constant 0 : index
    %c0_10 = arith.constant 0 : index
    %14 = vector.load %arg6[%c0_9, %c0_10] : memref<128x1xi32, #tpu.memory_space<vmem>>, vector<128x1xi32>
    %c0_11 = arith.constant 0 : index
    %c0_12 = arith.constant 0 : index
    %15 = vector.load %arg7[%c0_11, %c0_12] : memref<1x128xi32, #tpu.memory_space<vmem>>, vector<1x128xi32>
    %16 = vector.broadcast %14 : vector<128x1xi32> to vector<128x128xi32>
    %17 = vector.broadcast %15 : vector<1x128xi32> to vector<128x128xi32>
    %18 = arith.cmpi eq, %16, %17 : vector<128x128xi32>
    %cst_13 = arith.constant -1.000000e+30 : f32
    %19 = vector.broadcast %cst_13 : f32 to vector<128x128xf32>
    %20 = arith.select %18, %13, %19 : vector<128x128xi1>, vector<128x128xf32>
    %cst_14 = arith.constant 1.000000e+30 : f32
    %21 = vector.broadcast %cst_14 : f32 to vector<128x128xf32>
    %22 = arith.select %18, %21, %13 : vector<128x128xi1>, vector<128x128xf32>
    %c0_15 = arith.constant 0 : index
    %c0_16 = arith.constant 0 : index
    %23 = vector.load %arg9[%c0_15, %c0_16] : memref<128x1xf32, #tpu.memory_space<vmem>>, vector<128x1xf32>
    %cst_17 = arith.constant dense<0xFF800000> : vector<128xf32>
    %24 = vector.multi_reduction <maximumf>, %20, %cst_17 [1] : vector<128x128xf32> to vector<128xf32>
    %25 = vector.shape_cast %24 : vector<128xf32> to vector<128x1xf32>
    %26 = arith.maximumf %23, %25 : vector<128x1xf32>
    %c0_18 = arith.constant 0 : index
    %c0_19 = arith.constant 0 : index
    %27 = vector.load %arg9[%c0_18, %c0_19] : memref<128x1xf32, #tpu.memory_space<vmem>>, vector<128x1xf32>
    tpu.vector_store %arg9[%c0_18, %c0_19], %26 {strides = array<i32>} : memref<128x1xf32, #tpu.memory_space<vmem>>, vector<128x1xf32>,
    %c0_20 = arith.constant 0 : index
    %c0_21 = arith.constant 0 : index
    %28 = vector.load %arg10[%c0_20, %c0_21] : memref<128x1xf32, #tpu.memory_space<vmem>>, vector<128x1xf32>
    %cst_22 = arith.constant dense<0x7F800000> : vector<128xf32>
    %29 = vector.multi_reduction <minimumf>, %22, %cst_22 [1] : vector<128x128xf32> to vector<128xf32>
    %30 = vector.shape_cast %29 : vector<128xf32> to vector<128x1xf32>
    %31 = arith.minimumf %28, %30 : vector<128x1xf32>
    %c0_23 = arith.constant 0 : index
    %c0_24 = arith.constant 0 : index
    %32 = vector.load %arg10[%c0_23, %c0_24] : memref<128x1xf32, #tpu.memory_space<vmem>>, vector<128x1xf32>
    tpu.vector_store %arg10[%c0_23, %c0_24], %31 {strides = array<i32>} : memref<128x1xf32, #tpu.memory_space<vmem>>, vector<128x1xf32>,
    %c0_i32_25 = arith.constant 0 : i32
    %33 = arith.cmpi eq, %arg1, %c0_i32_25 : i32
    %34 = arith.extui %33 : i1 to i32
    %c0_i32_26 = arith.constant 0 : i32
    %35 = arith.cmpi ne, %34, %c0_i32_26 : i32
    scf.if %35 {
      %c0_27 = arith.constant 0 : index
      %c0_28 = arith.constant 0 : index
      %36 = vector.load %arg9[%c0_27, %c0_28] : memref<128x1xf32, #tpu.memory_space<vmem>>, vector<128x1xf32>
      %cst_29 = arith.constant 9.99999996E-13 : f32
      %37 = vector.broadcast %cst_29 : f32 to vector<128x1xf32>
      %38 = arith.maximumf %36, %37 : vector<128x1xf32>
      %39 = math.sqrt %38 : vector<128x1xf32>
      %c0_30 = arith.constant 0 : index
      %c0_31 = arith.constant 0 : index
      %40 = vector.load %arg10[%c0_30, %c0_31] : memref<128x1xf32, #tpu.memory_space<vmem>>, vector<128x1xf32>
      %cst_32 = arith.constant 9.99999996E-13 : f32
      %41 = vector.broadcast %cst_32 : f32 to vector<128x1xf32>
      %42 = arith.maximumf %40, %41 : vector<128x1xf32>
      %43 = math.sqrt %42 : vector<128x1xf32>
      %44 = arith.subf %39, %43 : vector<128x1xf32>
      %cst_33 = arith.constant 3.000000e-01 : f32
      %45 = vector.broadcast %cst_33 : f32 to vector<128x1xf32>
      %46 = arith.addf %44, %45 : vector<128x1xf32>
      %cst_34 = arith.constant 0.000000e+00 : f32
      %47 = vector.broadcast %cst_34 : f32 to vector<128x1xf32>
      %48 = arith.maximumf %46, %47 : vector<128x1xf32>
      %c0_35 = arith.constant 0 : index
      %c0_36 = arith.constant 0 : index
      %49 = vector.load %arg8[%c0_35, %c0_36] : memref<128x1xf32, #tpu.memory_space<vmem>>, vector<128x1xf32>
      tpu.vector_store %arg8[%c0_35, %c0_36], %48 {strides = array<i32>} : memref<128x1xf32, #tpu.memory_space<vmem>>, vector<128x1xf32>,
    } else {
    }
    return
  }
  func.func @transform_0(%arg0: i32, %arg1: i32) -> (i32, i32) {
    %c0_i32 = arith.constant 0 : i32
    %c0_i32_0 = arith.constant 0 : i32
    return %arg0, %c0_i32 : i32, i32
  }
  func.func @transform_1(%arg0: i32, %arg1: i32) -> (i32, i32) {
    %c0_i32 = arith.constant 0 : i32
    %c0_i32_0 = arith.constant 0 : i32
    return %c0_i32, %arg1 : i32, i32
  }
  func.func @transform_2(%arg0: i32, %arg1: i32) -> (i32, i32) {
    %c0_i32 = arith.constant 0 : i32
    %c0_i32_0 = arith.constant 0 : i32
    return %arg0, %c0_i32 : i32, i32
  }
  func.func @transform_3(%arg0: i32, %arg1: i32) -> (i32, i32) {
    %c0_i32 = arith.constant 0 : i32
    %c0_i32_0 = arith.constant 0 : i32
    return %c0_i32, %arg1 : i32, i32
  }
  func.func @transform_4(%arg0: i32, %arg1: i32) -> (i32, i32) {
    %c0_i32 = arith.constant 0 : i32
    %c0_i32_0 = arith.constant 0 : i32
    return %arg0, %c0_i32 : i32, i32
  }
  func.func @transform_5(%arg0: i32, %arg1: i32) -> (i32, i32) {
    %c0_i32 = arith.constant 0 : i32
    %c0_i32_0 = arith.constant 0 : i32
    return %c0_i32, %arg1 : i32, i32
  }
  func.func @transform_6(%arg0: i32, %arg1: i32) -> (i32, i32) {
    %c0_i32 = arith.constant 0 : i32
    %c0_i32_0 = arith.constant 0 : i32
    return %arg0, %c0_i32 : i32, i32
  }
}

</mosaic_0001>

<llo_original>
// kernel: tpu_custom_call.1
$region0: #{tpu_custom_call.1}
  #allocation0 [shape = 'u32[]', space=smem, size = 0x4, offset = 0x4, fixed_abs, tag = 'smem constant byte address 0x4 - core index']
  #allocation1 [shape = 'u32[144,128]{1,0:T(1,128)}', space=vmem, size = 0x12000, scoped, tag = 'internal scratch']
  #allocation2 [shape = 'f32[128,1]{1,0:T(8,128)}', space=vmem, size = 0x10000, scoped, tag = 'scratch operand']
  #allocation3 [shape = 'f32[128,1]{1,0:T(8,128)}', space=vmem, size = 0x10000, scoped, tag = 'scratch operand']
  %s0 = inlined_call_operand.vmem [shape: bf16[128,32], index: 0, kind: input, shape index: {}]
  %s1 = inlined_call_operand.vmem [shape: bf16[32,128], index: 1, kind: input, shape index: {}]
  %s2 = inlined_call_operand.vmem [shape: f32[128,1], index: 2, kind: input, shape index: {}]
  %s3 = inlined_call_operand.vmem [shape: f32[1,128], index: 3, kind: input, shape index: {}]
  %s4 = inlined_call_operand.vmem [shape: s32[128,1], index: 4, kind: input, shape index: {}]
  %s5 = inlined_call_operand.vmem [shape: s32[1,128], index: 5, kind: input, shape index: {}]
  %s6 = inlined_call_operand.vmem [shape: f32[128,1], index: 6, kind: output, shape index: {}]
  %s7 = sld [smem:[#allocation0]]
  $region42: #{tpu_custom_call.1} parent=0
    _
  %s9 = ssub.s32 1, %s7
  %s10 = scalar_select 0, %s9, %s7
  // Predicated region
  $region2: #{tpu_custom_call.1} parent=0 // pred_check
    _
  $region3: #{tpu_custom_call.1} parent=0 // pred_check_branch
    %12 = sbr.rel (0) target = $region5
  $region4: #{tpu_custom_call.1} parent=0 // pred_region
    _
  $region5: #{tpu_custom_call.1} parent=0 // pred_fallthru
    _
  // Predicated region
  $region6: #{tpu_custom_call.1} parent=0 // pred_check
    _
  $region7: #{tpu_custom_call.1} parent=0 // pred_check_branch
    %14 = sbr.rel (0) target = $region9
  $region8: #{tpu_custom_call.1} parent=0 // pred_region
    _
  $region9: #{tpu_custom_call.1} parent=0 // pred_fallthru
    _
  // Predicated region
  $region10: #{tpu_custom_call.1} parent=0 // pred_check
    _
  $region11: #{tpu_custom_call.1} parent=0 // pred_check_branch
    %16 = sbr.rel (0) target = $region13
  $region12: #{tpu_custom_call.1} parent=0 // pred_region
    _
  $region13: #{tpu_custom_call.1} parent=0 // pred_fallthru
    _
  // Predicated region
  $region14: #{tpu_custom_call.1} parent=0 // pred_check
    _
  $region15: #{tpu_custom_call.1} parent=0 // pred_check_branch
    %18 = sbr.rel (0) target = $region17
  $region16: #{tpu_custom_call.1} parent=0 // pred_region
    _
  $region17: #{tpu_custom_call.1} parent=0 // pred_fallthru
    _
  // Predicated region
  $region18: #{tpu_custom_call.1} parent=0 // pred_check
    _
  $region19: #{tpu_custom_call.1} parent=0 // pred_check_branch
    %20 = sbr.rel (0) target = $region21
  $region20: #{tpu_custom_call.1} parent=0 // pred_region
    _
  $region21: #{tpu_custom_call.1} parent=0 // pred_fallthru
    _
  // Predicated region
  $region22: #{tpu_custom_call.1} parent=0 // pred_check
    _
  $region23: #{tpu_custom_call.1} parent=0 // pred_check_branch
    %22 = sbr.rel (0) target = $region25
  $region24: #{tpu_custom_call.1} parent=0 // pred_region
    _
  $region25: #{tpu_custom_call.1} parent=0 // pred_fallthru
    _
  %p24 = scmp.eq.s32.totalorder 0, 0
  // Predicated region
  $region26: #{tpu_custom_call.1} parent=0 // pred_check
    %p25 = pneg %p24
  $region27: #{tpu_custom_call.1} parent=0 // pred_check_branch
    %27 = sbr.rel (%p25) target = $region29
  $region28: #{tpu_custom_call.1} parent=0 // pred_region
    %vm28 = vcmask 7168
    %29 = vst.msk [vmem:[#allocation2] sm:$0xff] %vm28, -1e+30
    %30 = vst.msk [vmem:[#allocation2 + $0x8] sm:$0xff] %vm28, -1e+30
    %31 = vst.msk [vmem:[#allocation2 + $0x10] sm:$0xff] %vm28, -1e+30
    %32 = vst.msk [vmem:[#allocation2 + $0x18] sm:$0xff] %vm28, -1e+30
    %33 = vst.msk [vmem:[#allocation2 + $0x20] sm:$0xff] %vm28, -1e+30
    %34 = vst.msk [vmem:[#allocation2 + $0x28] sm:$0xff] %vm28, -1e+30
    %35 = vst.msk [vmem:[#allocation2 + $0x30] sm:$0xff] %vm28, -1e+30
    %36 = vst.msk [vmem:[#allocation2 + $0x38] sm:$0xff] %vm28, -1e+30
    %37 = vst.msk [vmem:[#allocation2 + $0x40] sm:$0xff] %vm28, -1e+30
    %38 = vst.msk [vmem:[#allocation2 + $0x48] sm:$0xff] %vm28, -1e+30
    %39 = vst.msk [vmem:[#allocation2 + $0x50] sm:$0xff] %vm28, -1e+30
    %40 = vst.msk [vmem:[#allocation2 + $0x58] sm:$0xff] %vm28, -1e+30
    %41 = vst.msk [vmem:[#allocation2 + $0x60] sm:$0xff] %vm28, -1e+30
    %42 = vst.msk [vmem:[#allocation2 + $0x68] sm:$0xff] %vm28, -1e+30
    %43 = vst.msk [vmem:[#allocation2 + $0x70] sm:$0xff] %vm28, -1e+30
    %44 = vst.msk [vmem:[#allocation2 + $0x78] sm:$0xff] %vm28, -1e+30
    %45 = vst.msk [vmem:[#allocation3] sm:$0xff] %vm28, 1e+30
    %46 = vst.msk [vmem:[#allocation3 + $0x8] sm:$0xff] %vm28, 1e+30
    %47 = vst.msk [vmem:[#allocation3 + $0x10] sm:$0xff] %vm28, 1e+30
    %48 = vst.msk [vmem:[#allocation3 + $0x18] sm:$0xff] %vm28, 1e+30
    %49 = vst.msk [vmem:[#allocation3 + $0x20] sm:$0xff] %vm28, 1e+30
    %50 = vst.msk [vmem:[#allocation3 + $0x28] sm:$0xff] %vm28, 1e+30
    %51 = vst.msk [vmem:[#allocation3 + $0x30] sm:$0xff] %vm28, 1e+30
    %52 = vst.msk [vmem:[#allocation3 + $0x38] sm:$0xff] %vm28, 1e+30
    %53 = vst.msk [vmem:[#allocation3 + $0x40] sm:$0xff] %vm28, 1e+30
    %54 = vst.msk [vmem:[#allocation3 + $0x48] sm:$0xff] %vm28, 1e+30
    %55 = vst.msk [vmem:[#allocation3 + $0x50] sm:$0xff] %vm28, 1e+30
    %56 = vst.msk [vmem:[#allocation3 + $0x58] sm:$0xff] %vm28, 1e+30
    %57 = vst.msk [vmem:[#allocation3 + $0x60] sm:$0xff] %vm28, 1e+30
    %58 = vst.msk [vmem:[#allocation3 + $0x68] sm:$0xff] %vm28, 1e+30
    %59 = vst.msk [vmem:[#allocation3 + $0x70] sm:$0xff] %vm28, 1e+30
    %60 = vst.msk [vmem:[#allocation3 + $0x78] sm:$0xff] %vm28, 1e+30
  $region29: #{tpu_custom_call.1} parent=0 // pred_fallthru
    _
  %v61 = vld [vmem:[%s0] sm:$0xf]
  %v62 = vld [vmem:[%s0 + $0x4] sm:$0xf]
  %v63 = vld [vmem:[%s0 + $0x8] sm:$0xf]
  %v64 = vld [vmem:[%s0 + $0xc] sm:$0xf]
  %v65 = vld [vmem:[%s0 + $0x10] sm:$0xf]
  %v66 = vld [vmem:[%s0 + $0x14] sm:$0xf]
  %v67 = vld [vmem:[%s0 + $0x18] sm:$0xf]
  %v68 = vld [vmem:[%s0 + $0x1c] sm:$0xf]
  %v69 = vld [vmem:[%s0 + $0x20] sm:$0xf]
  %v70 = vld [vmem:[%s0 + $0x24] sm:$0xf]
  %v71 = vld [vmem:[%s0 + $0x28] sm:$0xf]
  %v72 = vld [vmem:[%s0 + $0x2c] sm:$0xf]
  %v73 = vld [vmem:[%s0 + $0x30] sm:$0xf]
  %v74 = vld [vmem:[%s0 + $0x34] sm:$0xf]
  %v75 = vld [vmem:[%s0 + $0x38] sm:$0xf]
  %v76 = vld [vmem:[%s0 + $0x3c] sm:$0xf]
  %v77 = vld [vmem:[%s1] sm:$0xf]
  %v78 = vld [vmem:[%s1 + $0x4] sm:$0xf]
  %v79 = vld [vmem:[%s1 + $0x8] sm:$0xf]
  %v80 = vld [vmem:[%s1 + $0xc] sm:$0xf]
  %v97 = vunpack.c.l.b16 %v61
  %v98 = vunpack.c.l.b16 %v62
  %v99 = vunpack.c.l.b16 %v63
  %v100 = vunpack.c.l.b16 %v64
  %v101 = vunpack.c.l.b16 %v65
  %v102 = vunpack.c.l.b16 %v66
  %v103 = vunpack.c.l.b16 %v67
  %v104 = vunpack.c.l.b16 %v68
  %v105 = vunpack.c.l.b16 %v69
  %v106 = vunpack.c.l.b16 %v70
  %v107 = vunpack.c.l.b16 %v71
  %v108 = vunpack.c.l.b16 %v72
  %v109 = vunpack.c.l.b16 %v73
  %v110 = vunpack.c.l.b16 %v74
  %v111 = vunpack.c.l.b16 %v75
  %v112 = vunpack.c.l.b16 %v76
  %v113 = vpack.c.b16 %v98, %v97
  %v114 = vpack.c.b16 %v100, %v99
  %v115 = vpack.c.b16 %v102, %v101
  %v116 = vpack.c.b16 %v104, %v103
  %v117 = vpack.c.b16 %v106, %v105
  %v118 = vpack.c.b16 %v108, %v107
  %v119 = vpack.c.b16 %v110, %v109
  %v120 = vpack.c.b16 %v112, %v111
  %v125 = vunpack.c.l.b16 %v77
  %v126 = vunpack.c.l.b16 %v78
  %v127 = vunpack.c.l.b16 %v79
  %v128 = vunpack.c.l.b16 %v80
  %v129 = vpack.c.b16 %v126, %v125
  %v130 = vpack.c.b16 %v128, %v127
  %vm133 = vcmask 261120
  %v135 = vsel %vm133, %v113, 0
  %v138 = vsel %vm133, %v114, 0
  %v141 = vsel %vm133, %v115, 0
  %v144 = vsel %vm133, %v116, 0
  %v147 = vsel %vm133, %v117, 0
  %v150 = vsel %vm133, %v118, 0
  %v153 = vsel %vm133, %v119, 0
  %v156 = vsel %vm133, %v120, 0
  %158 = vmatprep.subr.bf16.mxu0 0
  %159 = vmatpush1.bf16.msra.mxu0 0
  %160 = vmatprep.subr.bf16.mxu0 0
  %161 = vmatpush1.bf16.msra.mxu0 0
  %162 = vmatprep.subr.bf16.mxu0 0
  %163 = vmatpush1.bf16.msra.mxu0 0
  %164 = vmatprep.subr.bf16.mxu0 0
  %165 = vmatpush1.bf16.msra.mxu0 0
  %166 = vmatprep.subr.bf16.mxu0 0
  %167 = vmatpush1.bf16.msra.mxu0 0
  %168 = vmatprep.subr.bf16.mxu0 0
  %169 = vmatpush1.bf16.msra.mxu0 0
  %170 = vmatprep.subr.bf16.mxu0 0
  %171 = vmatpush1.bf16.msra.mxu0 %v130
  %172 = vmatprep.subr.bf16.mxu0 0
  %173 = vmatpush1.bf16.msra.mxu0 %v129
  %174 = vmatprep.subr.bf16.mxu0 0
  %175 = vmatpush2.bf16.msra.mxu0 0
  %176 = vmatprep.subr.bf16.mxu0 0
  %177 = vmatpush2.bf16.msra.mxu0 0
  %178 = vmatprep.subr.bf16.mxu0 0
  %179 = vmatpush2.bf16.msra.mxu0 0
  %180 = vmatprep.subr.bf16.mxu0 0
  %181 = vmatpush2.bf16.msra.mxu0 0
  %182 = vmatprep.subr.bf16.mxu0 0
  %183 = vmatpush2.bf16.msra.mxu0 0
  %184 = vmatprep.subr.bf16.mxu0 0
  %185 = vmatpush2.bf16.msra.mxu0 0
  %186 = vmatprep.subr.bf16.mxu0 0
  %187 = vmatpush2.bf16.msra.mxu0 0
  %188 = vmatprep.subr.bf16.mxu0 0
  %189 = vmatpush2.bf16.msra.mxu0 0
  %190 = vmatprep.mubr.bf16.mxu0 0
  %191 = vmatmul.mubr.bf16.gmra.mxu0 %v135
  %v192 = vpop.f32.mrf.mxu0
  %v193 = vadd.f32 0.0, %v192
  %v194 = vpop.f32.mrf.mxu0
  %v195 = vpop.f32.mrf.mxu0
  %v196 = vadd.f32 0.0, %v195
  %v197 = vpop.f32.mrf.mxu0
  %198 = vmatprep.mubr.bf16.mxu0 0
  %199 = vmatmul.mubr.bf16.gmra.mxu0 %v138
  %v200 = vpop.f32.mrf.mxu0
  %v201 = vadd.f32 0.0, %v200
  %v202 = vpop.f32.mrf.mxu0
  %v203 = vpop.f32.mrf.mxu0
  %v204 = vadd.f32 0.0, %v203
  %v205 = vpop.f32.mrf.mxu0
  %206 = vmatprep.mubr.bf16.mxu0 0
  %207 = vmatmul.mubr.bf16.gmra.mxu0 %v141
  %v208 = vpop.f32.mrf.mxu0
  %v209 = vadd.f32 0.0, %v208
  %v210 = vpop.f32.mrf.mxu0
  %v211 = vpop.f32.mrf.mxu0
  %v212 = vadd.f32 0.0, %v211
  %v213 = vpop.f32.mrf.mxu0
  %214 = vmatprep.mubr.bf16.mxu0 0
  %215 = vmatmul.mubr.bf16.gmra.mxu0 %v144
  %v216 = vpop.f32.mrf.mxu0
  %v217 = vadd.f32 0.0, %v216
  %v218 = vpop.f32.mrf.mxu0
  %v219 = vpop.f32.mrf.mxu0
  %v220 = vadd.f32 0.0, %v219
  %v221 = vpop.f32.mrf.mxu0
  %222 = vmatprep.mubr.bf16.mxu0 0
  %223 = vmatmul.mubr.bf16.gmra.mxu0 %v147
  %v224 = vpop.f32.mrf.mxu0
  %v225 = vadd.f32 0.0, %v224
  %v226 = vpop.f32.mrf.mxu0
  %v227 = vpop.f32.mrf.mxu0
  %v228 = vadd.f32 0.0, %v227
  %v229 = vpop.f32.mrf.mxu0
  %230 = vmatprep.mubr.bf16.mxu0 0
  %231 = vmatmul.mubr.bf16.gmra.mxu0 %v150
  %v232 = vpop.f32.mrf.mxu0
  %v233 = vadd.f32 0.0, %v232
  %v234 = vpop.f32.mrf.mxu0
  %v235 = vpop.f32.mrf.mxu0
  %v236 = vadd.f32 0.0, %v235
  %v237 = vpop.f32.mrf.mxu0
  %238 = vmatprep.mubr.bf16.mxu0 0
  %239 = vmatmul.mubr.bf16.gmra.mxu0 %v153
  %v240 = vpop.f32.mrf.mxu0
  %v241 = vadd.f32 0.0, %v240
  %v242 = vpop.f32.mrf.mxu0
  %v243 = vpop.f32.mrf.mxu0
  %v244 = vadd.f32 0.0, %v243
  %v245 = vpop.f32.mrf.mxu0
  %246 = vmatprep.mubr.bf16.mxu0 0
  %247 = vmatmul.mubr.bf16.gmra.mxu0 %v156
  %v248 = vpop.f32.mrf.mxu0
  %v249 = vadd.f32 0.0, %v248
  %v250 = vpop.f32.mrf.mxu0
  %v251 = vpop.f32.mrf.mxu0
  %v252 = vadd.f32 0.0, %v251
  %v253 = vpop.f32.mrf.mxu0
  %254 = vdwg.mxu0
  %v255 = vld [vmem:[%s2] sm:$0xff]
  %v256 = vld [vmem:[%s2 + $0x8] sm:$0xff]
  %v257 = vld [vmem:[%s2 + $0x10] sm:$0xff]
  %v258 = vld [vmem:[%s2 + $0x18] sm:$0xff]
  %v259 = vld [vmem:[%s2 + $0x20] sm:$0xff]
  %v260 = vld [vmem:[%s2 + $0x28] sm:$0xff]
  %v261 = vld [vmem:[%s2 + $0x30] sm:$0xff]
  %v262 = vld [vmem:[%s2 + $0x38] sm:$0xff]
  %v263 = vld [vmem:[%s2 + $0x40] sm:$0xff]
  %v264 = vld [vmem:[%s2 + $0x48] sm:$0xff]
  %v265 = vld [vmem:[%s2 + $0x50] sm:$0xff]
  %v266 = vld [vmem:[%s2 + $0x58] sm:$0xff]
  %v267 = vld [vmem:[%s2 + $0x60] sm:$0xff]
  %v268 = vld [vmem:[%s2 + $0x68] sm:$0xff]
  %v269 = vld [vmem:[%s2 + $0x70] sm:$0xff]
  %v270 = vld [vmem:[%s2 + $0x78] sm:$0xff]
  %v271 = vld [vmem:[%s3] sm:$0x1]
  %273 = vset.pattern.permute.xlu0 0
  %274 = vperm.xlu0 %273, %v255
  %v275 = vpop.permute.xlu0 %274
  %278 = vset.pattern.permute.xlu0 0
  %279 = vperm.xlu0 %278, %v256
  %v280 = vpop.permute.xlu0 %279
  %283 = vset.pattern.permute.xlu0 0
  %284 = vperm.xlu0 %283, %v257
  %v285 = vpop.permute.xlu0 %284
  %288 = vset.pattern.permute.xlu0 0
  %289 = vperm.xlu0 %288, %v258
  %v290 = vpop.permute.xlu0 %289
  %293 = vset.pattern.permute.xlu0 0
  %294 = vperm.xlu0 %293, %v259
  %v295 = vpop.permute.xlu0 %294
  %298 = vset.pattern.permute.xlu0 0
  %299 = vperm.xlu0 %298, %v260
  %v300 = vpop.permute.xlu0 %299
  %303 = vset.pattern.permute.xlu0 0
  %304 = vperm.xlu0 %303, %v261
  %v305 = vpop.permute.xlu0 %304
  %308 = vset.pattern.permute.xlu0 0
  %309 = vperm.xlu0 %308, %v262
  %v310 = vpop.permute.xlu0 %309
  %313 = vset.pattern.permute.xlu0 0
  %314 = vperm.xlu0 %313, %v263
  %v315 = vpop.permute.xlu0 %314
  %318 = vset.pattern.permute.xlu0 0
  %319 = vperm.xlu0 %318, %v264
  %v320 = vpop.permute.xlu0 %319
  %323 = vset.pattern.permute.xlu0 0
  %324 = vperm.xlu0 %323, %v265
  %v325 = vpop.permute.xlu0 %324
  %328 = vset.pattern.permute.xlu0 0
  %329 = vperm.xlu0 %328, %v266
  %v330 = vpop.permute.xlu0 %329
  %333 = vset.pattern.permute.xlu0 0
  %334 = vperm.xlu0 %333, %v267
  %v335 = vpop.permute.xlu0 %334
  %338 = vset.pattern.permute.xlu0 0
  %339 = vperm.xlu0 %338, %v268
  %v340 = vpop.permute.xlu0 %339
  %343 = vset.pattern.permute.xlu0 0
  %344 = vperm.xlu0 %343, %v269
  %v345 = vpop.permute.xlu0 %344
  %348 = vset.pattern.permute.xlu0 0
  %349 = vperm.xlu0 %348, %v270
  %v350 = vpop.permute.xlu0 %349
  %v353 = vlaneseq
  %v354 = vshrl.u32 %v353, 7
  %v355 = vsub.s32 0, %v354
  %v356 = vrot.slane %v271, %v355
  %v358 = vadd.f32 %v275, %v356
  %v359 = vadd.f32 %v280, %v356
  %v360 = vadd.f32 %v285, %v356
  %v361 = vadd.f32 %v290, %v356
  %v362 = vadd.f32 %v295, %v356
  %v363 = vadd.f32 %v300, %v356
  %v364 = vadd.f32 %v305, %v356
  %v365 = vadd.f32 %v310, %v356
  %v366 = vadd.f32 %v315, %v356
  %v367 = vadd.f32 %v320, %v356
  %v368 = vadd.f32 %v325, %v356
  %v369 = vadd.f32 %v330, %v356
  %v370 = vadd.f32 %v335, %v356
  %v371 = vadd.f32 %v340, %v356
  %v372 = vadd.f32 %v345, %v356
  %v373 = vadd.f32 %v350, %v356
  %v374 = vmul.f32 %v193, 2.0
  %v375 = vmul.f32 %v196, 2.0
  %v376 = vmul.f32 %v201, 2.0
  %v377 = vmul.f32 %v204, 2.0
  %v378 = vmul.f32 %v209, 2.0
  %v379 = vmul.f32 %v212, 2.0
  %v380 = vmul.f32 %v217, 2.0
  %v381 = vmul.f32 %v220, 2.0
  %v382 = vmul.f32 %v225, 2.0
  %v383 = vmul.f32 %v228, 2.0
  %v384 = vmul.f32 %v233, 2.0
  %v385 = vmul.f32 %v236, 2.0
  %v386 = vmul.f32 %v241, 2.0
  %v387 = vmul.f32 %v244, 2.0
  %v388 = vmul.f32 %v249, 2.0
  %v389 = vmul.f32 %v252, 2.0
  %v390 = vsub.f32 %v358, %v374
  %v391 = vsub.f32 %v359, %v375
  %v392 = vsub.f32 %v360, %v376
  %v393 = vsub.f32 %v361, %v377
  %v394 = vsub.f32 %v362, %v378
  %v395 = vsub.f32 %v363, %v379
  %v396 = vsub.f32 %v364, %v380
  %v397 = vsub.f32 %v365, %v381
  %v398 = vsub.f32 %v366, %v382
  %v399 = vsub.f32 %v367, %v383
  %v400 = vsub.f32 %v368, %v384
  %v401 = vsub.f32 %v369, %v385
  %v402 = vsub.f32 %v370, %v386
  %v403 = vsub.f32 %v371, %v387
  %v404 = vsub.f32 %v372, %v388
  %v405 = vsub.f32 %v373, %v389
  %v406 = vld [vmem:[%s4] sm:$0xff]
  %v407 = vld [vmem:[%s4 + $0x8] sm:$0xff]
  %v408 = vld [vmem:[%s4 + $0x10] sm:$0xff]
  %v409 = vld [vmem:[%s4 + $0x18] sm:$0xff]
  %v410 = vld [vmem:[%s4 + $0x20] sm:$0xff]
  %v411 = vld [vmem:[%s4 + $0x28] sm:$0xff]
  %v412 = vld [vmem:[%s4 + $0x30] sm:$0xff]
  %v413 = vld [vmem:[%s4 + $0x38] sm:$0xff]
  %v414 = vld [vmem:[%s4 + $0x40] sm:$0xff]
  %v415 = vld [vmem:[%s4 + $0x48] sm:$0xff]
  %v416 = vld [vmem:[%s4 + $0x50] sm:$0xff]
  %v417 = vld [vmem:[%s4 + $0x58] sm:$0xff]
  %v418 = vld [vmem:[%s4 + $0x60] sm:$0xff]
  %v419 = vld [vmem:[%s4 + $0x68] sm:$0xff]
  %v420 = vld [vmem:[%s4 + $0x70] sm:$0xff]
  %v421 = vld [vmem:[%s4 + $0x78] sm:$0xff]
  %v422 = vld [vmem:[%s5] sm:$0x1]
  %423 = vset.pattern.permute.xlu0 0
  %424 = vperm.xlu0 %423, %v406
  %v425 = vpop.permute.xlu0 %424
  %426 = vset.pattern.permute.xlu0 0
  %427 = vperm.xlu0 %426, %v407
  %v428 = vpop.permute.xlu0 %427
  %429 = vset.pattern.permute.xlu0 0
  %430 = vperm.xlu0 %429, %v408
  %v431 = vpop.permute.xlu0 %430
  %432 = vset.pattern.permute.xlu0 0
  %433 = vperm.xlu0 %432, %v409
  %v434 = vpop.permute.xlu0 %433
  %435 = vset.pattern.permute.xlu0 0
  %436 = vperm.xlu0 %435, %v410
  %v437 = vpop.permute.xlu0 %436
  %438 = vset.pattern.permute.xlu0 0
  %439 = vperm.xlu0 %438, %v411
  %v440 = vpop.permute.xlu0 %439
  %441 = vset.pattern.permute.xlu0 0
  %442 = vperm.xlu0 %441, %v412
  %v443 = vpop.permute.xlu0 %442
  %444 = vset.pattern.permute.xlu0 0
  %445 = vperm.xlu0 %444, %v413
  %v446 = vpop.permute.xlu0 %445
  %447 = vset.pattern.permute.xlu0 0
  %448 = vperm.xlu0 %447, %v414
  %v449 = vpop.permute.xlu0 %448
  %450 = vset.pattern.permute.xlu0 0
  %451 = vperm.xlu0 %450, %v415
  %v452 = vpop.permute.xlu0 %451
  %453 = vset.pattern.permute.xlu0 0
  %454 = vperm.xlu0 %453, %v416
  %v455 = vpop.permute.xlu0 %454
  %456 = vset.pattern.permute.xlu0 0
  %457 = vperm.xlu0 %456, %v417
  %v458 = vpop.permute.xlu0 %457
  %459 = vset.pattern.permute.xlu0 0
  %460 = vperm.xlu0 %459, %v418
  %v461 = vpop.permute.xlu0 %460
  %462 = vset.pattern.permute.xlu0 0
  %463 = vperm.xlu0 %462, %v419
  %v464 = vpop.permute.xlu0 %463
  %465 = vset.pattern.permute.xlu0 0
  %466 = vperm.xlu0 %465, %v420
  %v467 = vpop.permute.xlu0 %466
  %468 = vset.pattern.permute.xlu0 0
  %469 = vperm.xlu0 %468, %v421
  %v470 = vpop.permute.xlu0 %469
  %v471 = vlaneseq
  %v472 = vshrl.u32 %v471, 7
  %v473 = vsub.s32 0, %v472
  %v474 = vrot.slane %v422, %v473
  %vm475 = vcmp.eq.s32.totalorder %v425, %v474
  %vm476 = vcmp.eq.s32.totalorder %v428, %v474
  %vm477 = vcmp.eq.s32.totalorder %v431, %v474
  %vm478 = vcmp.eq.s32.totalorder %v434, %v474
  %vm479 = vcmp.eq.s32.totalorder %v437, %v474
  %vm480 = vcmp.eq.s32.totalorder %v440, %v474
  %vm481 = vcmp.eq.s32.totalorder %v443, %v474
  %vm482 = vcmp.eq.s32.totalorder %v446, %v474
  %vm483 = vcmp.eq.s32.totalorder %v449, %v474
  %vm484 = vcmp.eq.s32.totalorder %v452, %v474
  %vm485 = vcmp.eq.s32.totalorder %v455, %v474
  %vm486 = vcmp.eq.s32.totalorder %v458, %v474
  %vm487 = vcmp.eq.s32.totalorder %v461, %v474
  %vm488 = vcmp.eq.s32.totalorder %v464, %v474
  %vm489 = vcmp.eq.s32.totalorder %v467, %v474
  %vm490 = vcmp.eq.s32.totalorder %v470, %v474
  %v491 = vsel %vm475, %v390, -1e+30
  %v492 = vsel %vm476, %v391, -1e+30
  %v493 = vsel %vm477, %v392, -1e+30
  %v494 = vsel %vm478, %v393, -1e+30
  %v495 = vsel %vm479, %v394, -1e+30
  %v496 = vsel %vm480, %v395, -1e+30
  %v497 = vsel %vm481, %v396, -1e+30
  %v498 = vsel %vm482, %v397, -1e+30
  %v499 = vsel %vm483, %v398, -1e+30
  %v500 = vsel %vm484, %v399, -1e+30
  %v501 = vsel %vm485, %v400, -1e+30
  %v502 = vsel %vm486, %v401, -1e+30
  %v503 = vsel %vm487, %v402, -1e+30
  %v504 = vsel %vm488, %v403, -1e+30
  %v505 = vsel %vm489, %v404, -1e+30
  %v506 = vsel %vm490, %v405, -1e+30
  %v507 = vsel %vm475, 1e+30, %v390
  %v508 = vsel %vm476, 1e+30, %v391
  %v509 = vsel %vm477, 1e+30, %v392
  %v510 = vsel %vm478, 1e+30, %v393
  %v511 = vsel %vm479, 1e+30, %v394
  %v512 = vsel %vm480, 1e+30, %v395
  %v513 = vsel %vm481, 1e+30, %v396
  %v514 = vsel %vm482, 1e+30, %v397
  %v515 = vsel %vm483, 1e+30, %v398
  %v516 = vsel %vm484, 1e+30, %v399
  %v517 = vsel %vm485, 1e+30, %v400
  %v518 = vsel %vm486, 1e+30, %v401
  %v519 = vsel %vm487, 1e+30, %v402
  %v520 = vsel %vm488, 1e+30, %v403
  %v521 = vsel %vm489, 1e+30, %v404
  %v522 = vsel %vm490, 1e+30, %v405
  %v523 = vld [vmem:[#allocation2] sm:$0xff]
  %v524 = vld [vmem:[#allocation2 + $0x8] sm:$0xff]
  %v525 = vld [vmem:[#allocation2 + $0x10] sm:$0xff]
  %v526 = vld [vmem:[#allocation2 + $0x18] sm:$0xff]
  %v527 = vld [vmem:[#allocation2 + $0x20] sm:$0xff]
  %v528 = vld [vmem:[#allocation2 + $0x28] sm:$0xff]
  %v529 = vld [vmem:[#allocation2 + $0x30] sm:$0xff]
  %v530 = vld [vmem:[#allocation2 + $0x38] sm:$0xff]
  %v531 = vld [vmem:[#allocation2 + $0x40] sm:$0xff]
  %v532 = vld [vmem:[#allocation2 + $0x48] sm:$0xff]
  %v533 = vld [vmem:[#allocation2 + $0x50] sm:$0xff]
  %v534 = vld [vmem:[#allocation2 + $0x58] sm:$0xff]
  %v535 = vld [vmem:[#allocation2 + $0x60] sm:$0xff]
  %v536 = vld [vmem:[#allocation2 + $0x68] sm:$0xff]
  %v537 = vld [vmem:[#allocation2 + $0x70] sm:$0xff]
  %v538 = vld [vmem:[#allocation2 + $0x78] sm:$0xff]
  %539 = vmax.xlane.f32.xlu0 %v491
  %v540 = vpop.xlane.xlu0 %539
  %541 = vmax.xlane.f32.xlu0 %v492
  %v542 = vpop.xlane.xlu0 %541
  %543 = vmax.xlane.f32.xlu0 %v493
  %v544 = vpop.xlane.xlu0 %543
  %545 = vmax.xlane.f32.xlu0 %v494
  %v546 = vpop.xlane.xlu0 %545
  %547 = vmax.xlane.f32.xlu0 %v495
  %v548 = vpop.xlane.xlu0 %547
  %549 = vmax.xlane.f32.xlu0 %v496
  %v550 = vpop.xlane.xlu0 %549
  %551 = vmax.xlane.f32.xlu0 %v497
  %v552 = vpop.xlane.xlu0 %551
  %553 = vmax.xlane.f32.xlu0 %v498
  %v554 = vpop.xlane.xlu0 %553
  %555 = vmax.xlane.f32.xlu0 %v499
  %v556 = vpop.xlane.xlu0 %555
  %557 = vmax.xlane.f32.xlu0 %v500
  %v558 = vpop.xlane.xlu0 %557
  %559 = vmax.xlane.f32.xlu0 %v501
  %v560 = vpop.xlane.xlu0 %559
  %561 = vmax.xlane.f32.xlu0 %v502
  %v562 = vpop.xlane.xlu0 %561
  %563 = vmax.xlane.f32.xlu0 %v503
  %v564 = vpop.xlane.xlu0 %563
  %565 = vmax.xlane.f32.xlu0 %v504
  %v566 = vpop.xlane.xlu0 %565
  %567 = vmax.xlane.f32.xlu0 %v505
  %v568 = vpop.xlane.xlu0 %567
  %569 = vmax.xlane.f32.xlu0 %v506
  %v570 = vpop.xlane.xlu0 %569
  %v571 = vmax.f32 %v523, %v540
  %v572 = vmax.f32 %v524, %v542
  %v573 = vmax.f32 %v525, %v544
  %v574 = vmax.f32 %v526, %v546
  %v575 = vmax.f32 %v527, %v548
  %v576 = vmax.f32 %v528, %v550
  %v577 = vmax.f32 %v529, %v552
  %v578 = vmax.f32 %v530, %v554
  %v579 = vmax.f32 %v531, %v556
  %v580 = vmax.f32 %v532, %v558
  %v581 = vmax.f32 %v533, %v560
  %v582 = vmax.f32 %v534, %v562
  %v583 = vmax.f32 %v535, %v564
  %v584 = vmax.f32 %v536, %v566
  %v585 = vmax.f32 %v537, %v568
  %v586 = vmax.f32 %v538, %v570
  %vm587 = vcmask 7168
  %588 = vst.msk [vmem:[#allocation2] sm:$0xff] %vm587, %v571
  %589 = vst.msk [vmem:[#allocation2 + $0x8] sm:$0xff] %vm587, %v572
  %590 = vst.msk [vmem:[#allocation2 + $0x10] sm:$0xff] %vm587, %v573
  %591 = vst.msk [vmem:[#allocation2 + $0x18] sm:$0xff] %vm587, %v574
  %592 = vst.msk [vmem:[#allocation2 + $0x20] sm:$0xff] %vm587, %v575
  %593 = vst.msk [vmem:[#allocation2 + $0x28] sm:$0xff] %vm587, %v576
  %594 = vst.msk [vmem:[#allocation2 + $0x30] sm:$0xff] %vm587, %v577
  %595 = vst.msk [vmem:[#allocation2 + $0x38] sm:$0xff] %vm587, %v578
  %596 = vst.msk [vmem:[#allocation2 + $0x40] sm:$0xff] %vm587, %v579
  %597 = vst.msk [vmem:[#allocation2 + $0x48] sm:$0xff] %vm587, %v580
  %598 = vst.msk [vmem:[#allocation2 + $0x50] sm:$0xff] %vm587, %v581
  %599 = vst.msk [vmem:[#allocation2 + $0x58] sm:$0xff] %vm587, %v582
  %600 = vst.msk [vmem:[#allocation2 + $0x60] sm:$0xff] %vm587, %v583
  %601 = vst.msk [vmem:[#allocation2 + $0x68] sm:$0xff] %vm587, %v584
  %602 = vst.msk [vmem:[#allocation2 + $0x70] sm:$0xff] %vm587, %v585
  %603 = vst.msk [vmem:[#allocation2 + $0x78] sm:$0xff] %vm587, %v586
  %v604 = vld [vmem:[#allocation3] sm:$0xff]
  %v605 = vld [vmem:[#allocation3 + $0x8] sm:$0xff]
  %v606 = vld [vmem:[#allocation3 + $0x10] sm:$0xff]
  %v607 = vld [vmem:[#allocation3 + $0x18] sm:$0xff]
  %v608 = vld [vmem:[#allocation3 + $0x20] sm:$0xff]
  %v609 = vld [vmem:[#allocation3 + $0x28] sm:$0xff]
  %v610 = vld [vmem:[#allocation3 + $0x30] sm:$0xff]
  %v611 = vld [vmem:[#allocation3 + $0x38] sm:$0xff]
  %v612 = vld [vmem:[#allocation3 + $0x40] sm:$0xff]
  %v613 = vld [vmem:[#allocation3 + $0x48] sm:$0xff]
  %v614 = vld [vmem:[#allocation3 + $0x50] sm:$0xff]
  %v615 = vld [vmem:[#allocation3 + $0x58] sm:$0xff]
  %v616 = vld [vmem:[#allocation3 + $0x60] sm:$0xff]
  %v617 = vld [vmem:[#allocation3 + $0x68] sm:$0xff]
  %v618 = vld [vmem:[#allocation3 + $0x70] sm:$0xff]
  %v619 = vld [vmem:[#allocation3 + $0x78] sm:$0xff]
  %620 = vmin.xlane.f32.xlu0 %v507
  %v621 = vpop.xlane.xlu0 %620
  %622 = vmin.xlane.f32.xlu0 %v508
  %v623 = vpop.xlane.xlu0 %622
  %624 = vmin.xlane.f32.xlu0 %v509
  %v625 = vpop.xlane.xlu0 %624
  %626 = vmin.xlane.f32.xlu0 %v510
  %v627 = vpop.xlane.xlu0 %626
  %628 = vmin.xlane.f32.xlu0 %v511
  %v629 = vpop.xlane.xlu0 %628
  %630 = vmin.xlane.f32.xlu0 %v512
  %v631 = vpop.xlane.xlu0 %630
  %632 = vmin.xlane.f32.xlu0 %v513
  %v633 = vpop.xlane.xlu0 %632
  %634 = vmin.xlane.f32.xlu0 %v514
  %v635 = vpop.xlane.xlu0 %634
  %636 = vmin.xlane.f32.xlu0 %v515
  %v637 = vpop.xlane.xlu0 %636
  %638 = vmin.xlane.f32.xlu0 %v516
  %v639 = vpop.xlane.xlu0 %638
  %640 = vmin.xlane.f32.xlu0 %v517
  %v641 = vpop.xlane.xlu0 %640
  %642 = vmin.xlane.f32.xlu0 %v518
  %v643 = vpop.xlane.xlu0 %642
  %644 = vmin.xlane.f32.xlu0 %v519
  %v645 = vpop.xlane.xlu0 %644
  %646 = vmin.xlane.f32.xlu0 %v520
  %v647 = vpop.xlane.xlu0 %646
  %648 = vmin.xlane.f32.xlu0 %v521
  %v649 = vpop.xlane.xlu0 %648
  %650 = vmin.xlane.f32.xlu0 %v522
  %v651 = vpop.xlane.xlu0 %650
  %v652 = vmin.f32 %v604, %v621
  %v653 = vmin.f32 %v605, %v623
  %v654 = vmin.f32 %v606, %v625
  %v655 = vmin.f32 %v607, %v627
  %v656 = vmin.f32 %v608, %v629
  %v657 = vmin.f32 %v609, %v631
  %v658 = vmin.f32 %v610, %v633
  %v659 = vmin.f32 %v611, %v635
  %v660 = vmin.f32 %v612, %v637
  %v661 = vmin.f32 %v613, %v639
  %v662 = vmin.f32 %v614, %v641
  %v663 = vmin.f32 %v615, %v643
  %v664 = vmin.f32 %v616, %v645
  %v665 = vmin.f32 %v617, %v647
  %v666 = vmin.f32 %v618, %v649
  %v667 = vmin.f32 %v619, %v651
  %668 = vst.msk [vmem:[#allocation3] sm:$0xff] %vm587, %v652
  %669 = vst.msk [vmem:[#allocation3 + $0x8] sm:$0xff] %vm587, %v653
  %670 = vst.msk [vmem:[#allocation3 + $0x10] sm:$0xff] %vm587, %v654
  %671 = vst.msk [vmem:[#allocation3 + $0x18] sm:$0xff] %vm587, %v655
  %672 = vst.msk [vmem:[#allocation3 + $0x20] sm:$0xff] %vm587, %v656
  %673 = vst.msk [vmem:[#allocation3 + $0x28] sm:$0xff] %vm587, %v657
  %674 = vst.msk [vmem:[#allocation3 + $0x30] sm:$0xff] %vm587, %v658
  %675 = vst.msk [vmem:[#allocation3 + $0x38] sm:$0xff] %vm587, %v659
  %676 = vst.msk [vmem:[#allocation3 + $0x40] sm:$0xff] %vm587, %v660
  %677 = vst.msk [vmem:[#allocation3 + $0x48] sm:$0xff] %vm587, %v661
  %678 = vst.msk [vmem:[#allocation3 + $0x50] sm:$0xff] %vm587, %v662
  %679 = vst.msk [vmem:[#allocation3 + $0x58] sm:$0xff] %vm587, %v663
  %680 = vst.msk [vmem:[#allocation3 + $0x60] sm:$0xff] %vm587, %v664
  %681 = vst.msk [vmem:[#allocation3 + $0x68] sm:$0xff] %vm587, %v665
  %682 = vst.msk [vmem:[#allocation3 + $0x70] sm:$0xff] %vm587, %v666
  %683 = vst.msk [vmem:[#allocation3 + $0x78] sm:$0xff] %vm587, %v667
  // Predicated region
  $region30: #{tpu_custom_call.1} parent=0 // pred_check
    %p684 = pneg %p24
  $region31: #{tpu_custom_call.1} parent=0 // pred_check_branch
    %686 = sbr.rel (%p684) target = $region33
  $region32: #{tpu_custom_call.1} parent=0 // pred_region
    %v687 = vld [vmem:[#allocation2] sm:$0xff]
    %v688 = vld [vmem:[#allocation2 + $0x8] sm:$0xff]
    %v689 = vld [vmem:[#allocation2 + $0x10] sm:$0xff]
    %v690 = vld [vmem:[#allocation2 + $0x18] sm:$0xff]
    %v691 = vld [vmem:[#allocation2 + $0x20] sm:$0xff]
    %v692 = vld [vmem:[#allocation2 + $0x28] sm:$0xff]
    %v693 = vld [vmem:[#allocation2 + $0x30] sm:$0xff]
    %v694 = vld [vmem:[#allocation2 + $0x38] sm:$0xff]
    %v695 = vld [vmem:[#allocation2 + $0x40] sm:$0xff]
    %v696 = vld [vmem:[#allocation2 + $0x48] sm:$0xff]
    %v697 = vld [vmem:[#allocation2 + $0x50] sm:$0xff]
    %v698 = vld [vmem:[#allocation2 + $0x58] sm:$0xff]
    %v699 = vld [vmem:[#allocation2 + $0x60] sm:$0xff]
    %v700 = vld [vmem:[#allocation2 + $0x68] sm:$0xff]
    %v701 = vld [vmem:[#allocation2 + $0x70] sm:$0xff]
    %v702 = vld [vmem:[#allocation2 + $0x78] sm:$0xff]
    %v703 = vmax.f32 %v687, 1e-12
    %v704 = vmax.f32 %v688, 1e-12
    %v705 = vmax.f32 %v689, 1e-12
    %v706 = vmax.f32 %v690, 1e-12
    %v707 = vmax.f32 %v691, 1e-12
    %v708 = vmax.f32 %v692, 1e-12
    %v709 = vmax.f32 %v693, 1e-12
    %v710 = vmax.f32 %v694, 1e-12
    %v711 = vmax.f32 %v695, 1e-12
    %v712 = vmax.f32 %v696, 1e-12
    %v713 = vmax.f32 %v697, 1e-12
    %v714 = vmax.f32 %v698, 1e-12
    %v715 = vmax.f32 %v699, 1e-12
    %v716 = vmax.f32 %v700, 1e-12
    %v717 = vmax.f32 %v701, 1e-12
    %v718 = vmax.f32 %v702, 1e-12
    %v719 = vrsqrt.pop %v703
    %v720 = vmul.f32 %v703, %v719
    %vm721 = vcmp.eq.f32.partialorder %v703, inf
    %v722 = vsel %vm721, %v703, %v720
    %vm723 = vcmp.eq.f32.partialorder %v703, 0.0
    %v724 = vand.u32 %v703, 2147483648
    %v725 = vsel %vm723, %v724, %v722
    %v726 = vrsqrt.pop %v704
    %v727 = vmul.f32 %v704, %v726
    %vm728 = vcmp.eq.f32.partialorder %v704, inf
    %v729 = vsel %vm728, %v704, %v727
    %vm730 = vcmp.eq.f32.partialorder %v704, 0.0
    %v731 = vand.u32 %v704, 2147483648
    %v732 = vsel %vm730, %v731, %v729
    %v733 = vrsqrt.pop %v705
    %v734 = vmul.f32 %v705, %v733
    %vm735 = vcmp.eq.f32.partialorder %v705, inf
    %v736 = vsel %vm735, %v705, %v734
    %vm737 = vcmp.eq.f32.partialorder %v705, 0.0
    %v738 = vand.u32 %v705, 2147483648
    %v739 = vsel %vm737, %v738, %v736
    %v740 = vrsqrt.pop %v706
    %v741 = vmul.f32 %v706, %v740
    %vm742 = vcmp.eq.f32.partialorder %v706, inf
    %v743 = vsel %vm742, %v706, %v741
    %vm744 = vcmp.eq.f32.partialorder %v706, 0.0
    %v745 = vand.u32 %v706, 2147483648
    %v746 = vsel %vm744, %v745, %v743
    %v747 = vrsqrt.pop %v707
    %v748 = vmul.f32 %v707, %v747
    %vm749 = vcmp.eq.f32.partialorder %v707, inf
    %v750 = vsel %vm749, %v707, %v748
    %vm751 = vcmp.eq.f32.partialorder %v707, 0.0
    %v752 = vand.u32 %v707, 2147483648
    %v753 = vsel %vm751, %v752, %v750
    %v754 = vrsqrt.pop %v708
    %v755 = vmul.f32 %v708, %v754
    %vm756 = vcmp.eq.f32.partialorder %v708, inf
    %v757 = vsel %vm756, %v708, %v755
    %vm758 = vcmp.eq.f32.partialorder %v708, 0.0
    %v759 = vand.u32 %v708, 2147483648
    %v760 = vsel %vm758, %v759, %v757
    %v761 = vrsqrt.pop %v709
    %v762 = vmul.f32 %v709, %v761
    %vm763 = vcmp.eq.f32.partialorder %v709, inf
    %v764 = vsel %vm763, %v709, %v762
    %vm765 = vcmp.eq.f32.partialorder %v709, 0.0
    %v766 = vand.u32 %v709, 2147483648
    %v767 = vsel %vm765, %v766, %v764
    %v768 = vrsqrt.pop %v710
    %v769 = vmul.f32 %v710, %v768
    %vm770 = vcmp.eq.f32.partialorder %v710, inf
    %v771 = vsel %vm770, %v710, %v769
    %vm772 = vcmp.eq.f32.partialorder %v710, 0.0
    %v773 = vand.u32 %v710, 2147483648
    %v774 = vsel %vm772, %v773, %v771
    %v775 = vrsqrt.pop %v711
    %v776 = vmul.f32 %v711, %v775
    %vm777 = vcmp.eq.f32.partialorder %v711, inf
    %v778 = vsel %vm777, %v711, %v776
    %vm779 = vcmp.eq.f32.partialorder %v711, 0.0
    %v780 = vand.u32 %v711, 2147483648
    %v781 = vsel %vm779, %v780, %v778
    %v782 = vrsqrt.pop %v712
    %v783 = vmul.f32 %v712, %v782
    %vm784 = vcmp.eq.f32.partialorder %v712, inf
    %v785 = vsel %vm784, %v712, %v783
    %vm786 = vcmp.eq.f32.partialorder %v712, 0.0
    %v787 = vand.u32 %v712, 2147483648
    %v788 = vsel %vm786, %v787, %v785
    %v789 = vrsqrt.pop %v713
    %v790 = vmul.f32 %v713, %v789
    %vm791 = vcmp.eq.f32.partialorder %v713, inf
    %v792 = vsel %vm791, %v713, %v790
    %vm793 = vcmp.eq.f32.partialorder %v713, 0.0
    %v794 = vand.u32 %v713, 2147483648
    %v795 = vsel %vm793, %v794, %v792
    %v796 = vrsqrt.pop %v714
    %v797 = vmul.f32 %v714, %v796
    %vm798 = vcmp.eq.f32.partialorder %v714, inf
    %v799 = vsel %vm798, %v714, %v797
    %vm800 = vcmp.eq.f32.partialorder %v714, 0.0
    %v801 = vand.u32 %v714, 2147483648
    %v802 = vsel %vm800, %v801, %v799
    %v803 = vrsqrt.pop %v715
    %v804 = vmul.f32 %v715, %v803
    %vm805 = vcmp.eq.f32.partialorder %v715, inf
    %v806 = vsel %vm805, %v715, %v804
    %vm807 = vcmp.eq.f32.partialorder %v715, 0.0
    %v808 = vand.u32 %v715, 2147483648
    %v809 = vsel %vm807, %v808, %v806
    %v810 = vrsqrt.pop %v716
    %v811 = vmul.f32 %v716, %v810
    %vm812 = vcmp.eq.f32.partialorder %v716, inf
    %v813 = vsel %vm812, %v716, %v811
    %vm814 = vcmp.eq.f32.partialorder %v716, 0.0
    %v815 = vand.u32 %v716, 2147483648
    %v816 = vsel %vm814, %v815, %v813
    %v817 = vrsqrt.pop %v717
    %v818 = vmul.f32 %v717, %v817
    %vm819 = vcmp.eq.f32.partialorder %v717, inf
    %v820 = vsel %vm819, %v717, %v818
    %vm821 = vcmp.eq.f32.partialorder %v717, 0.0
    %v822 = vand.u32 %v717, 2147483648
    %v823 = vsel %vm821, %v822, %v820
    %v824 = vrsqrt.pop %v718
    %v825 = vmul.f32 %v718, %v824
    %vm826 = vcmp.eq.f32.partialorder %v718, inf
    %v827 = vsel %vm826, %v718, %v825
    %vm828 = vcmp.eq.f32.partialorder %v718, 0.0
    %v829 = vand.u32 %v718, 2147483648
    %v830 = vsel %vm828, %v829, %v827
    %v831 = vld [vmem:[#allocation3] sm:$0xff]
    %v832 = vld [vmem:[#allocation3 + $0x8] sm:$0xff]
    %v833 = vld [vmem:[#allocation3 + $0x10] sm:$0xff]
    %v834 = vld [vmem:[#allocation3 + $0x18] sm:$0xff]
    %v835 = vld [vmem:[#allocation3 + $0x20] sm:$0xff]
    %v836 = vld [vmem:[#allocation3 + $0x28] sm:$0xff]
    %v837 = vld [vmem:[#allocation3 + $0x30] sm:$0xff]
    %v838 = vld [vmem:[#allocation3 + $0x38] sm:$0xff]
    %v839 = vld [vmem:[#allocation3 + $0x40] sm:$0xff]
    %v840 = vld [vmem:[#allocation3 + $0x48] sm:$0xff]
    %v841 = vld [vmem:[#allocation3 + $0x50] sm:$0xff]
    %v842 = vld [vmem:[#allocation3 + $0x58] sm:$0xff]
    %v843 = vld [vmem:[#allocation3 + $0x60] sm:$0xff]
    %v844 = vld [vmem:[#allocation3 + $0x68] sm:$0xff]
    %v845 = vld [vmem:[#allocation3 + $0x70] sm:$0xff]
    %v846 = vld [vmem:[#allocation3 + $0x78] sm:$0xff]
    %v847 = vmax.f32 %v831, 1e-12
    %v848 = vmax.f32 %v832, 1e-12
    %v849 = vmax.f32 %v833, 1e-12
    %v850 = vmax.f32 %v834, 1e-12
    %v851 = vmax.f32 %v835, 1e-12
    %v852 = vmax.f32 %v836, 1e-12
    %v853 = vmax.f32 %v837, 1e-12
    %v854 = vmax.f32 %v838, 1e-12
    %v855 = vmax.f32 %v839, 1e-12
    %v856 = vmax.f32 %v840, 1e-12
    %v857 = vmax.f32 %v841, 1e-12
    %v858 = vmax.f32 %v842, 1e-12
    %v859 = vmax.f32 %v843, 1e-12
    %v860 = vmax.f32 %v844, 1e-12
    %v861 = vmax.f32 %v845, 1e-12
    %v862 = vmax.f32 %v846, 1e-12
    %v863 = vrsqrt.pop %v847
    %v864 = vmul.f32 %v847, %v863
    %vm865 = vcmp.eq.f32.partialorder %v847, inf
    %v866 = vsel %vm865, %v847, %v864
    %vm867 = vcmp.eq.f32.partialorder %v847, 0.0
    %v868 = vand.u32 %v847, 2147483648
    %v869 = vsel %vm867, %v868, %v866
    %v870 = vrsqrt.pop %v848
    %v871 = vmul.f32 %v848, %v870
    %vm872 = vcmp.eq.f32.partialorder %v848, inf
    %v873 = vsel %vm872, %v848, %v871
    %vm874 = vcmp.eq.f32.partialorder %v848, 0.0
    %v875 = vand.u32 %v848, 2147483648
    %v876 = vsel %vm874, %v875, %v873
    %v877 = vrsqrt.pop %v849
    %v878 = vmul.f32 %v849, %v877
    %vm879 = vcmp.eq.f32.partialorder %v849, inf
    %v880 = vsel %vm879, %v849, %v878
    %vm881 = vcmp.eq.f32.partialorder %v849, 0.0
    %v882 = vand.u32 %v849, 2147483648
    %v883 = vsel %vm881, %v882, %v880
    %v884 = vrsqrt.pop %v850
    %v885 = vmul.f32 %v850, %v884
    %vm886 = vcmp.eq.f32.partialorder %v850, inf
    %v887 = vsel %vm886, %v850, %v885
    %vm888 = vcmp.eq.f32.partialorder %v850, 0.0
    %v889 = vand.u32 %v850, 2147483648
    %v890 = vsel %vm888, %v889, %v887
    %v891 = vrsqrt.pop %v851
    %v892 = vmul.f32 %v851, %v891
    %vm893 = vcmp.eq.f32.partialorder %v851, inf
    %v894 = vsel %vm893, %v851, %v892
    %vm895 = vcmp.eq.f32.partialorder %v851, 0.0
    %v896 = vand.u32 %v851, 2147483648
    %v897 = vsel %vm895, %v896, %v894
    %v898 = vrsqrt.pop %v852
    %v899 = vmul.f32 %v852, %v898
    %vm900 = vcmp.eq.f32.partialorder %v852, inf
    %v901 = vsel %vm900, %v852, %v899
    %vm902 = vcmp.eq.f32.partialorder %v852, 0.0
    %v903 = vand.u32 %v852, 2147483648
    %v904 = vsel %vm902, %v903, %v901
    %v905 = vrsqrt.pop %v853
    %v906 = vmul.f32 %v853, %v905
    %vm907 = vcmp.eq.f32.partialorder %v853, inf
    %v908 = vsel %vm907, %v853, %v906
    %vm909 = vcmp.eq.f32.partialorder %v853, 0.0
    %v910 = vand.u32 %v853, 2147483648
    %v911 = vsel %vm909, %v910, %v908
    %v912 = vrsqrt.pop %v854
    %v913 = vmul.f32 %v854, %v912
    %vm914 = vcmp.eq.f32.partialorder %v854, inf
    %v915 = vsel %vm914, %v854, %v913
    %vm916 = vcmp.eq.f32.partialorder %v854, 0.0
    %v917 = vand.u32 %v854, 2147483648
    %v918 = vsel %vm916, %v917, %v915
    %v919 = vrsqrt.pop %v855
    %v920 = vmul.f32 %v855, %v919
    %vm921 = vcmp.eq.f32.partialorder %v855, inf
    %v922 = vsel %vm921, %v855, %v920
    %vm923 = vcmp.eq.f32.partialorder %v855, 0.0
    %v924 = vand.u32 %v855, 2147483648
    %v925 = vsel %vm923, %v924, %v922
    %v926 = vrsqrt.pop %v856
    %v927 = vmul.f32 %v856, %v926
    %vm928 = vcmp.eq.f32.partialorder %v856, inf
    %v929 = vsel %vm928, %v856, %v927
    %vm930 = vcmp.eq.f32.partialorder %v856, 0.0
    %v931 = vand.u32 %v856, 2147483648
    %v932 = vsel %vm930, %v931, %v929
    %v933 = vrsqrt.pop %v857
    %v934 = vmul.f32 %v857, %v933
    %vm935 = vcmp.eq.f32.partialorder %v857, inf
    %v936 = vsel %vm935, %v857, %v934
    %vm937 = vcmp.eq.f32.partialorder %v857, 0.0
    %v938 = vand.u32 %v857, 2147483648
    %v939 = vsel %vm937, %v938, %v936
    %v940 = vrsqrt.pop %v858
    %v941 = vmul.f32 %v858, %v940
    %vm942 = vcmp.eq.f32.partialorder %v858, inf
    %v943 = vsel %vm942, %v858, %v941
    %vm944 = vcmp.eq.f32.partialorder %v858, 0.0
    %v945 = vand.u32 %v858, 2147483648
    %v946 = vsel %vm944, %v945, %v943
    %v947 = vrsqrt.pop %v859
    %v948 = vmul.f32 %v859, %v947
    %vm949 = vcmp.eq.f32.partialorder %v859, inf
    %v950 = vsel %vm949, %v859, %v948
    %vm951 = vcmp.eq.f32.partialorder %v859, 0.0
    %v952 = vand.u32 %v859, 2147483648
    %v953 = vsel %vm951, %v952, %v950
    %v954 = vrsqrt.pop %v860
    %v955 = vmul.f32 %v860, %v954
    %vm956 = vcmp.eq.f32.partialorder %v860, inf
    %v957 = vsel %vm956, %v860, %v955
    %vm958 = vcmp.eq.f32.partialorder %v860, 0.0
    %v959 = vand.u32 %v860, 2147483648
    %v960 = vsel %vm958, %v959, %v957
    %v961 = vrsqrt.pop %v861
    %v962 = vmul.f32 %v861, %v961
    %vm963 = vcmp.eq.f32.partialorder %v861, inf
    %v964 = vsel %vm963, %v861, %v962
    %vm965 = vcmp.eq.f32.partialorder %v861, 0.0
    %v966 = vand.u32 %v861, 2147483648
    %v967 = vsel %vm965, %v966, %v964
    %v968 = vrsqrt.pop %v862
    %v969 = vmul.f32 %v862, %v968
    %vm970 = vcmp.eq.f32.partialorder %v862, inf
    %v971 = vsel %vm970, %v862, %v969
    %vm972 = vcmp.eq.f32.partialorder %v862, 0.0
    %v973 = vand.u32 %v862, 2147483648
    %v974 = vsel %vm972, %v973, %v971
    %v975 = vsub.f32 %v725, %v869
    %v976 = vsub.f32 %v732, %v876
    %v977 = vsub.f32 %v739, %v883
    %v978 = vsub.f32 %v746, %v890
    %v979 = vsub.f32 %v753, %v897
    %v980 = vsub.f32 %v760, %v904
    %v981 = vsub.f32 %v767, %v911
    %v982 = vsub.f32 %v774, %v918
    %v983 = vsub.f32 %v781, %v925
    %v984 = vsub.f32 %v788, %v932
    %v985 = vsub.f32 %v795, %v939
    %v986 = vsub.f32 %v802, %v946
    %v987 = vsub.f32 %v809, %v953
    %v988 = vsub.f32 %v816, %v960
    %v989 = vsub.f32 %v823, %v967
    %v990 = vsub.f32 %v830, %v974
    %v991 = vadd.f32 %v975, 0.3
    %v992 = vadd.f32 %v976, 0.3
    %v993 = vadd.f32 %v977, 0.3
    %v994 = vadd.f32 %v978, 0.3
    %v995 = vadd.f32 %v979, 0.3
    %v996 = vadd.f32 %v980, 0.3
    %v997 = vadd.f32 %v981, 0.3
    %v998 = vadd.f32 %v982, 0.3
    %v999 = vadd.f32 %v983, 0.3
    %v1000 = vadd.f32 %v984, 0.3
    %v1001 = vadd.f32 %v985, 0.3
    %v1002 = vadd.f32 %v986, 0.3
    %v1003 = vadd.f32 %v987, 0.3
    %v1004 = vadd.f32 %v988, 0.3
    %v1005 = vadd.f32 %v989, 0.3
    %v1006 = vadd.f32 %v990, 0.3
    %v1007 = vmax.f32 %v991, 0.0
    %v1008 = vmax.f32 %v992, 0.0
    %v1009 = vmax.f32 %v993, 0.0
    %v1010 = vmax.f32 %v994, 0.0
    %v1011 = vmax.f32 %v995, 0.0
    %v1012 = vmax.f32 %v996, 0.0
    %v1013 = vmax.f32 %v997, 0.0
    %v1014 = vmax.f32 %v998, 0.0
    %v1015 = vmax.f32 %v999, 0.0
    %v1016 = vmax.f32 %v1000, 0.0
    %v1017 = vmax.f32 %v1001, 0.0
    %v1018 = vmax.f32 %v1002, 0.0
    %v1019 = vmax.f32 %v1003, 0.0
    %v1020 = vmax.f32 %v1004, 0.0
    %v1021 = vmax.f32 %v1005, 0.0
    %v1022 = vmax.f32 %v1006, 0.0
    %1023 = vst.msk [vmem:[%s6] sm:$0xff] %vm587, %v1007
    %1024 = vst.msk [vmem:[%s6 + $0x8] sm:$0xff] %vm587, %v1008
    %1025 = vst.msk [vmem:[%s6 + $0x10] sm:$0xff] %vm587, %v1009
    %1026 = vst.msk [vmem:[%s6 + $0x18] sm:$0xff] %vm587, %v1010
    %1027 = vst.msk [vmem:[%s6 + $0x20] sm:$0xff] %vm587, %v1011
    %1028 = vst.msk [vmem:[%s6 + $0x28] sm:$0xff] %vm587, %v1012
    %1029 = vst.msk [vmem:[%s6 + $0x30] sm:$0xff] %vm587, %v1013
    %1030 = vst.msk [vmem:[%s6 + $0x38] sm:$0xff] %vm587, %v1014
    %1031 = vst.msk [vmem:[%s6 + $0x40] sm:$0xff] %vm587, %v1015
    %1032 = vst.msk [vmem:[%s6 + $0x48] sm:$0xff] %vm587, %v1016
    %1033 = vst.msk [vmem:[%s6 + $0x50] sm:$0xff] %vm587, %v1017
    %1034 = vst.msk [vmem:[%s6 + $0x58] sm:$0xff] %vm587, %v1018
    %1035 = vst.msk [vmem:[%s6 + $0x60] sm:$0xff] %vm587, %v1019
    %1036 = vst.msk [vmem:[%s6 + $0x68] sm:$0xff] %vm587, %v1020
    %1037 = vst.msk [vmem:[%s6 + $0x70] sm:$0xff] %vm587, %v1021
    %1038 = vst.msk [vmem:[%s6 + $0x78] sm:$0xff] %vm587, %v1022
  $region33: #{tpu_custom_call.1} parent=0 // pred_fallthru
    _
  // Predicated region
  $region34: #{tpu_custom_call.1} parent=0 // pred_check
    _
  $region35: #{tpu_custom_call.1} parent=0 // pred_check_branch
    %1040 = sbr.rel (0) target = $region37
  $region36: #{tpu_custom_call.1} parent=0 // pred_region
    _
  $region37: #{tpu_custom_call.1} parent=0 // pred_fallthru
    _
  // Predicated region
  $region38: #{tpu_custom_call.1} parent=0 // pred_check
    _
  $region39: #{tpu_custom_call.1} parent=0 // pred_check_branch
    %1042 = sbr.rel (0) target = $region41
  $region40: #{tpu_custom_call.1} parent=0 // pred_region
    _
  $region41: #{tpu_custom_call.1} parent=0 // pred_fallthru
    _

</llo_original>
